<compile_context>
chip_gen: v7x
topology: tpu7x:2x2x1
jax: 0.10.0
libtpu: 0.0.40
codegen_flags: <defaults>
</compile_context>

<pallas_src>
import functools

import jax
import jax.numpy as jnp
from jax.experimental import pallas as pl
from jax.experimental.pallas import tpu as pltpu

LEAKY_SLOPE = 0.01  # torch.nn.functional.leaky_relu default negative_slope
_LANE = 128
_SUBLANE = 8


def _round_up(x, m):
    return (x + m - 1) // m * m


def _leaky_relu(x):
    # max(x, 0.01*x) == leaky_relu(x) for slope < 1; one mul + one max.
    return jnp.maximum(x, LEAKY_SLOPE * x)


def _encoder_kernel(x_ref, w1_ref, b1_ref, w2_ref, b2_ref, w3_ref, b3_ref,
                    out_ref):
    # x_ref: (TB, n_pix_p); w*: (in_p, out_p) in compute dtype (bf16 default);
    # b*: (1, out_p) f32; out_ref: (TB, lat_p) out_dtype.
    # Matmuls run on the MXU in the weights' dtype with f32 accumulation; all
    # elementwise math stays in f32 (v5e has no bf16 VPU/EUP).
    cdt = w1_ref.dtype
    x = x_ref[...].astype(cdt)
    h = jnp.dot(x, w1_ref[...], preferred_element_type=jnp.float32) + b1_ref[...]
    h = _leaky_relu(h)
    h = jnp.dot(h.astype(cdt), w2_ref[...],
                preferred_element_type=jnp.float32) + b2_ref[...]
    h = _leaky_relu(h)
    h = jnp.dot(h.astype(cdt), w3_ref[...],
                preferred_element_type=jnp.float32) + b3_ref[...]
    out_ref[...] = jax.nn.sigmoid(h).astype(out_ref.dtype)


def prepare_params(params, *, use_f32_mxu=False):
    """Pad (lane-align) and cast the encoder parameters ONCE, outside the
    per-call forward.

    params: (w1, b1, w2, b2, w3, b3) with w_i of shape (in_features,
    out_features) and b_i of shape (out_features,) or (1, out_features).
    Zero padding is mathematically inert.
    """
    w1, b1, w2, b2, w3, b3 = params
    compute_dtype = jnp.float32 if use_f32_mxu else jnp.bfloat16

    n_pixels, hidden = w1.shape
    latent_dim = w3.shape[1]
    n_pix_p = _round_up(n_pixels, _LANE)
    hid_p = _round_up(hidden, _LANE)
    lat_p = _round_up(latent_dim, _LANE)

    def pad_w(w, r, c):
        return jnp.pad(w, ((0, r - w.shape[0]), (0, c - w.shape[1]))).astype(
            compute_dtype)

    def pad_b(b, c):
        b = b.reshape(1, -1)
        return jnp.pad(b, ((0, 0), (0, c - b.shape[1]))).astype(jnp.float32)

    return (pad_w(w1, n_pix_p, hid_p), pad_b(b1, hid_p),
            pad_w(w2, hid_p, hid_p), pad_b(b2, hid_p),
            pad_w(w3, hid_p, lat_p), pad_b(b3, lat_p))


def nonlinear_encoder_forward(image, padded_params, *, n_pixels, latent_dim,
                              out_dtype=jnp.float32):
    """image: (B, 1, slen, slen) float32 NCHW (any layout flattening to
    (B, n_pixels)). padded_params: output of prepare_params().
    Returns (B, latent_dim) in out_dtype (default float32)."""
    w1p, b1p, w2p, b2p, w3p, b3p = padded_params
    compute_dtype = w1p.dtype
    n_pix_p, hid_p = w1p.shape
    lat_p = w3p.shape[1]

    x = image.reshape(-1, n_pixels)  # matches torch .view(-1, n_pixels)
    B = x.shape[0]

    cdt_bytes = jnp.dtype(compute_dtype).itemsize
    out_bytes = jnp.dtype(out_dtype).itemsize
    w_bytes = sum(int(a.size) * jnp.dtype(a.dtype).itemsize
                  for a in (w1p, b1p, w2p, b2p, w3p, b3p))

    # ---- per-row VMEM accounting (incl. in-kernel intermediates) ------------
    #   x block      : double-buffered, counted at f32 to be conservative
    #   out block    : double-buffered
    #   intermediates: compute-dtype copy of x, two f32 h tensors + their
    #                  compute-dtype cast copies, logits + sigmoid result.
    per_row = (2 * n_pix_p * 4
               + 2 * lat_p * out_bytes
               + n_pix_p * cdt_bytes
               + 2 * hid_p * (4 + cdt_bytes)
               + 2 * lat_p * 4)
    budget = 40 * 1024 * 1024                       # estimate target (<= limit)
    tb_max = max(16, (budget - 2 * w_bytes) // per_row)
    tb_cap = min(4096, max(16, (tb_max // 16) * 16))  # 16-row grain (bf16 tiles)

    # ---- batch tile selection -----------------------------------------------
    if B <= 256:
        # Tiny batch: one grid step; block == full array so no tiling
        # constraints apply.
        TB = _round_up(B, _SUBLANE)
    else:
        # At least 2 grid steps: keeps both v7x TensorCores busy
        # (dimension_semantics="parallel") and enables DMA/compute overlap.
        num_steps = max(2, pl.cdiv(B, tb_cap))
        TB = min(tb_cap, _round_up(pl.cdiv(B, num_steps), 16))
    B_pad = _round_up(B, TB)

    if (B_pad != B) or (n_pix_p != n_pixels):
        # A wrapper pass over x is unavoidable -> fuse the compute-dtype cast
        # into the pad (halves the kernel's x DMA bytes in the bf16 path).
        xp = jnp.pad(x, ((0, B_pad - B),
                         (0, n_pix_p - n_pixels))).astype(compute_dtype)
    else:
        # No wrapper pass at all; the kernel casts per tile (cheaper than a
        # standalone convert HLO that re-reads/writes the whole activation).
        xp = x

    vmem_limit = int(min(48 << 20,
                         max(16 << 20, 2 * w_bytes + TB * per_row + (8 << 20))))

    grid = (B_pad // TB,)
    const_map = lambda i: (0, 0)

    out_padded = pl.pallas_call(
        _encoder_kernel,
        out_shape=jax.ShapeDtypeStruct((B_pad, lat_p), out_dtype),
        grid=grid,
        in_specs=[
            pl.BlockSpec((TB, n_pix_p), lambda i: (i, 0)),   # x: tiled over batch
            pl.BlockSpec((n_pix_p, hid_p), const_map),       # w1: VMEM-resident
            pl.BlockSpec((1, hid_p), const_map),             # b1
            pl.BlockSpec((hid_p, hid_p), const_map),         # w2
            pl.BlockSpec((1, hid_p), const_map),             # b2
            pl.BlockSpec((hid_p, lat_p), const_map),         # w3
            pl.BlockSpec((1, lat_p), const_map),             # b3
        ],
        out_specs=pl.BlockSpec((TB, lat_p), lambda i: (i, 0)),
        compiler_params=pltpu.CompilerParams(
            dimension_semantics=("parallel",),
            vmem_limit_bytes=vmem_limit,
        ),
    )(xp, w1p, b1p, w2p, b2p, w3p, b3p)

    return out_padded[:B, :latent_dim]


def init_params(key, n_pixels, hidden, latent_dim):
    """PyTorch-style Linear init: U(-1/sqrt(fan_in), 1/sqrt(fan_in)).

    Weights are stored transposed, i.e. (in_features, out_features), so the
    kernel computes x @ W (+ b) directly on the MXU.
    """
    def linear(k, fan_in, fan_out):
        kw, kb = jax.random.split(k)
        bound = 1.0 / jnp.sqrt(fan_in)
        w = jax.random.uniform(kw, (fan_in, fan_out), jnp.float32, -bound, bound)
        b = jax.random.uniform(kb, (1, fan_out), jnp.float32, -bound, bound)
        return w, b

    k1, k2, k3 = jax.random.split(key, 3)
    w1, b1 = linear(k1, n_pixels, hidden)
    w2, b2 = linear(k2, hidden, hidden)
    w3, b3 = linear(k3, hidden, latent_dim)
    return (w1, b1, w2, b2, w3, b3)


if __name__ == "__main__":
    # Small shapes consistent with the module's constructor args.
    slen = 16          # -> n_pixels = 256
    latent_dim = 32
    hidden = 200       # fixed by the module definition (fc1/fc2 out = 200)
    batch = 8

    n_pixels = slen * slen

    key = jax.random.PRNGKey(0)
    k_img, k_par = jax.random.split(key)

    # NCHW input, like PyTorch MNIST images.
    image = jax.random.uniform(k_img, (batch, 1, slen, slen), jnp.float32)
    params = init_params(k_par, n_pixels, hidden, latent_dim)

    # Pure-JAX reference of the same math (f32).
    x = image.reshape(-1, n_pixels)
    w1, b1, w2, b2, w3, b3 = params
    h = x @ w1 + b1
    h = jnp.maximum(h, LEAKY_SLOPE * h)
    h = h @ w2 + b2
    h = jnp.maximum(h, LEAKY_SLOPE * h)
    ref = jax.nn.sigmoid(h @ w3 + b3)

    fwd = jax.jit(functools.partial(nonlinear_encoder_forward,
                                    n_pixels=n_pixels, latent_dim=latent_dim))

    # Default path: bf16 MXU operands, f32 accumulation + f32 elementwise.
    padded_bf16 = prepare_params(params)            # hoisted: pad/cast once
    out = jax.block_until_ready(fwd(image, padded_bf16))
    assert out.shape == (batch, latent_dim)
    assert jnp.allclose(out, ref, atol=3e-2, rtol=3e-2)

    # Opt-in f32-MXU path: near-exact vs. the reference.
    padded_f32 = prepare_params(params, use_f32_mxu=True)
    out_f32 = jax.block_until_ready(fwd(image, padded_f32))
    assert out_f32.shape == (batch, latent_dim)
    assert jnp.allclose(out_f32, ref, atol=1e-5, rtol=1e-5)

    print("KERNEL_OK")
</pallas_src>

<mosaic_0001>
module attributes {stable_mosaic.version = 11 : i64} {
  func.func @_encoder_kernel(%arg0: i32, %arg1: memref<8x256xf32, #tpu.memory_space<vmem>>, %arg2: memref<256x256xbf16, #tpu.memory_space<vmem>>, %arg3: memref<1x256xf32, #tpu.memory_space<vmem>>, %arg4: memref<256x256xbf16, #tpu.memory_space<vmem>>, %arg5: memref<1x256xf32, #tpu.memory_space<vmem>>, %arg6: memref<256x128xbf16, #tpu.memory_space<vmem>>, %arg7: memref<1x128xf32, #tpu.memory_space<vmem>>, %arg8: memref<8x128xf32, #tpu.memory_space<vmem>>) attributes {dimension_semantics = [#tpu.dimension_semantics<parallel>], iteration_bounds = array<i64: 1>, scalar_prefetch = 0 : i64, scratch_operands = 0 : i64, tpu.core_type = #tpu.core_type<tc>, window_params = [{transform_indices = @transform_0, window_bounds = array<i64: 8, 256>}, {pipeline_mode = #tpu.pipeline_mode<synchronous>, transform_indices = @transform_1, window_bounds = array<i64: 256, 256>}, {pipeline_mode = #tpu.pipeline_mode<synchronous>, transform_indices = @transform_2, window_bounds = array<i64: 1, 256>}, {pipeline_mode = #tpu.pipeline_mode<synchronous>, transform_indices = @transform_3, window_bounds = array<i64: 256, 256>}, {pipeline_mode = #tpu.pipeline_mode<synchronous>, transform_indices = @transform_4, window_bounds = array<i64: 1, 256>}, {pipeline_mode = #tpu.pipeline_mode<synchronous>, transform_indices = @transform_5, window_bounds = array<i64: 256, 128>}, {pipeline_mode = #tpu.pipeline_mode<synchronous>, transform_indices = @transform_6, window_bounds = array<i64: 1, 128>}, {transform_indices = @transform_7, window_bounds = array<i64: 8, 128>}]} {
    %c0 = arith.constant 0 : index
    %c0_0 = arith.constant 0 : index
    %0 = vector.load %arg1[%c0, %c0_0] : memref<8x256xf32, #tpu.memory_space<vmem>>, vector<8x256xf32>
    %1 = arith.truncf %0 : vector<8x256xf32> to vector<8x256xbf16>
    %c0_1 = arith.constant 0 : index
    %c0_2 = arith.constant 0 : index
    %2 = vector.load %arg2[%c0_1, %c0_2] : memref<256x256xbf16, #tpu.memory_space<vmem>>, vector<256x256xbf16>
    %cst = arith.constant dense<0.000000e+00> : vector<8x256xf32>
    %3 = tpu.matmul %1, %2, %cst {dimension_numbers = #tpu.dot_dimension_numbers<[1], [0], [0], [1], [0, 0, 1, 1], [], []>} : vector<8x256xbf16>, vector<256x256xbf16>, vector<8x256xf32> -> vector<8x256xf32>
    %c0_3 = arith.constant 0 : index
    %c0_4 = arith.constant 0 : index
    %4 = vector.load %arg3[%c0_3, %c0_4] : memref<1x256xf32, #tpu.memory_space<vmem>>, vector<1x256xf32>
    %5 = vector.broadcast %4 : vector<1x256xf32> to vector<8x256xf32>
    %6 = arith.addf %3, %5 : vector<8x256xf32>
    %cst_5 = arith.constant 0.00999999977 : f32
    %7 = vector.broadcast %cst_5 : f32 to vector<8x256xf32>
    %8 = arith.mulf %7, %6 : vector<8x256xf32>
    %9 = arith.maximumf %6, %8 : vector<8x256xf32>
    %10 = arith.truncf %9 : vector<8x256xf32> to vector<8x256xbf16>
    %c0_6 = arith.constant 0 : index
    %c0_7 = arith.constant 0 : index
    %11 = vector.load %arg4[%c0_6, %c0_7] : memref<256x256xbf16, #tpu.memory_space<vmem>>, vector<256x256xbf16>
    %cst_8 = arith.constant dense<0.000000e+00> : vector<8x256xf32>
    %12 = tpu.matmul %10, %11, %cst_8 {dimension_numbers = #tpu.dot_dimension_numbers<[1], [0], [0], [1], [0, 0, 1, 1], [], []>} : vector<8x256xbf16>, vector<256x256xbf16>, vector<8x256xf32> -> vector<8x256xf32>
    %c0_9 = arith.constant 0 : index
    %c0_10 = arith.constant 0 : index
    %13 = vector.load %arg5[%c0_9, %c0_10] : memref<1x256xf32, #tpu.memory_space<vmem>>, vector<1x256xf32>
    %14 = vector.broadcast %13 : vector<1x256xf32> to vector<8x256xf32>
    %15 = arith.addf %12, %14 : vector<8x256xf32>
    %cst_11 = arith.constant 0.00999999977 : f32
    %16 = vector.broadcast %cst_11 : f32 to vector<8x256xf32>
    %17 = arith.mulf %16, %15 : vector<8x256xf32>
    %18 = arith.maximumf %15, %17 : vector<8x256xf32>
    %19 = arith.truncf %18 : vector<8x256xf32> to vector<8x256xbf16>
    %c0_12 = arith.constant 0 : index
    %c0_13 = arith.constant 0 : index
    %20 = vector.load %arg6[%c0_12, %c0_13] : memref<256x128xbf16, #tpu.memory_space<vmem>>, vector<256x128xbf16>
    %cst_14 = arith.constant dense<0.000000e+00> : vector<8x128xf32>
    %21 = tpu.matmul %19, %20, %cst_14 {dimension_numbers = #tpu.dot_dimension_numbers<[1], [0], [0], [1], [0, 0, 1, 1], [], []>} : vector<8x256xbf16>, vector<256x128xbf16>, vector<8x128xf32> -> vector<8x128xf32>
    %c0_15 = arith.constant 0 : index
    %c0_16 = arith.constant 0 : index
    %22 = vector.load %arg7[%c0_15, %c0_16] : memref<1x128xf32, #tpu.memory_space<vmem>>, vector<1x128xf32>
    %23 = vector.broadcast %22 : vector<1x128xf32> to vector<8x128xf32>
    %24 = arith.addf %21, %23 : vector<8x128xf32>
    %25 = arith.negf %24 : vector<8x128xf32>
    %26 = math.exp %25 : vector<8x128xf32>
    %cst_17 = arith.constant 1.000000e+00 : f32
    %27 = vector.broadcast %cst_17 : f32 to vector<8x128xf32>
    %28 = arith.addf %27, %26 : vector<8x128xf32>
    %29 = arith.divf %27, %28 : vector<8x128xf32>
    %c0_18 = arith.constant 0 : index
    %c0_19 = arith.constant 0 : index
    %30 = vector.load %arg8[%c0_18, %c0_19] : memref<8x128xf32, #tpu.memory_space<vmem>>, vector<8x128xf32>
    tpu.vector_store %arg8[%c0_18, %c0_19], %29 {strides = array<i32>} : memref<8x128xf32, #tpu.memory_space<vmem>>, vector<8x128xf32>,
    return
  }
  func.func @transform_0(%arg0: i32) -> (i32, i32) {
    %c0_i32 = arith.constant 0 : i32
    %c0_i32_0 = arith.constant 0 : i32
    return %arg0, %c0_i32 : i32, i32
  }
  func.func @transform_1(%arg0: i32) -> (i32, i32) {
    %c0_i32 = arith.constant 0 : i32
    %c0_i32_0 = arith.constant 0 : i32
    %c0_i32_1 = arith.constant 0 : i32
    return %c0_i32, %c0_i32_0 : i32, i32
  }
  func.func @transform_2(%arg0: i32) -> (i32, i32) {
    %c0_i32 = arith.constant 0 : i32
    %c0_i32_0 = arith.constant 0 : i32
    %c0_i32_1 = arith.constant 0 : i32
    return %c0_i32, %c0_i32_0 : i32, i32
  }
  func.func @transform_3(%arg0: i32) -> (i32, i32) {
    %c0_i32 = arith.constant 0 : i32
    %c0_i32_0 = arith.constant 0 : i32
    %c0_i32_1 = arith.constant 0 : i32
    return %c0_i32, %c0_i32_0 : i32, i32
  }
  func.func @transform_4(%arg0: i32) -> (i32, i32) {
    %c0_i32 = arith.constant 0 : i32
    %c0_i32_0 = arith.constant 0 : i32
    %c0_i32_1 = arith.constant 0 : i32
    return %c0_i32, %c0_i32_0 : i32, i32
  }
  func.func @transform_5(%arg0: i32) -> (i32, i32) {
    %c0_i32 = arith.constant 0 : i32
    %c0_i32_0 = arith.constant 0 : i32
    %c0_i32_1 = arith.constant 0 : i32
    return %c0_i32, %c0_i32_0 : i32, i32
  }
  func.func @transform_6(%arg0: i32) -> (i32, i32) {
    %c0_i32 = arith.constant 0 : i32
    %c0_i32_0 = arith.constant 0 : i32
    %c0_i32_1 = arith.constant 0 : i32
    return %c0_i32, %c0_i32_0 : i32, i32
  }
  func.func @transform_7(%arg0: i32) -> (i32, i32) {
    %c0_i32 = arith.constant 0 : i32
    %c0_i32_0 = arith.constant 0 : i32
    return %arg0, %c0_i32 : i32, i32
  }
}

</mosaic_0001>

<llo_original>
// kernel: nonlinear_encoder_forward.1
$region0: #{nonlinear_encoder_forward.1}
  #allocation0 [shape = 'u32[]', space=smem, size = 0x4, offset = 0x4, fixed_abs, tag = 'smem constant byte address 0x4 - core index']
  #allocation1 [shape = 'u32[144,128]{1,0:T(1,128)}', space=vmem, size = 0x12000, scoped, tag = 'internal scratch']
  %s0 = inlined_call_operand.vmem [shape: f32[8,256], index: 0, kind: input, shape index: {}]
  %s1 = inlined_call_operand.hbm [shape: bf16[256,256], index: 1, kind: input, shape index: {}]
  %s2 = inlined_call_operand.vmem [shape: f32[1,256], index: 2, kind: input, shape index: {}]
  %s3 = inlined_call_operand.hbm [shape: bf16[256,256], index: 3, kind: input, shape index: {}]
  %s4 = inlined_call_operand.vmem [shape: f32[1,256], index: 4, kind: input, shape index: {}]
  %s5 = inlined_call_operand.vmem [shape: bf16[256,128], index: 5, kind: input, shape index: {}]
  %s6 = inlined_call_operand.vmem [shape: f32[1,128], index: 6, kind: input, shape index: {}]
  %s7 = inlined_call_operand.hbm [shape: f32[8,128], index: 7, kind: output, shape index: {}]
  %s8 = sld [smem:[#allocation0]]
  $region46: #{nonlinear_encoder_forward.1} parent=0
    _
  %s10 = ssub.s32 1, %s8
  %s11 = scalar_select 0, %s10, %s8
  $region1: #{nonlinear_encoder_forward.1} parent=0
    #allocation2 [shape = 'u8[131072]{0}', space=vmem, size = 0x20000, scoped, tag = 'input window, operand 1, single buffered']
    #allocation3 [shape = 's32[1]{0}', space=sflag, size = 0x4, scoped, tag = 'scoped memory for nonlinear_encoder_forward.1']
    #allocation4 [shape = 's32[1]{0}', space=sflag, size = 0x4, scoped, tag = 'scoped memory for nonlinear_encoder_forward.1']
    #allocation5 [shape = 'u8[131072]{0}', space=vmem, size = 0x20000, scoped, tag = 'input window, operand 3, single buffered']
    #allocation6 [shape = 's32[1]{0}', space=sflag, size = 0x4, scoped, tag = 'scoped memory for nonlinear_encoder_forward.1']
    #allocation7 [shape = 'u8[4096]{0}', space=vmem, size = 0x1000, scoped, tag = 'output window, operand 0, single buffered']
    %12 = vsyncpa [#allocation3], 0
    %13 = vsyncpa [#allocation6], 0
    %14 = vsyncpa [#allocation4], 0
    // Predicated region
    $region2: #{nonlinear_encoder_forward.1} parent=1 // pred_check
      _
    $region3: #{nonlinear_encoder_forward.1} parent=1 // pred_check_branch
      %16 = sbr.rel (0) target = $region5
    $region4: #{nonlinear_encoder_forward.1} parent=1 // pred_region
      _
    $region5: #{nonlinear_encoder_forward.1} parent=1 // pred_fallthru
      _
    // Predicated region
    $region6: #{nonlinear_encoder_forward.1} parent=1 // pred_check
      _
    $region7: #{nonlinear_encoder_forward.1} parent=1 // pred_check_branch
      %18 = sbr.rel (0) target = $region9
    $region8: #{nonlinear_encoder_forward.1} parent=1 // pred_region
      %s20 = ssub.s32 4096, 4096
      %21 = vsyncadd [#allocation3], %s20
      %s22 = sshll.u32 [#allocation2], 4
      %s23 = int_to_ptr.vmem [resolvable:$true] %s22
      %28 = dma.hbm_to_vmem [thread:$0]  %s1, 4096, %s23, [#allocation3], 128, 128, 8
    $region9: #{nonlinear_encoder_forward.1} parent=1 // pred_fallthru
      _
    // Predicated region
    $region10: #{nonlinear_encoder_forward.1} parent=1 // pred_check
      _
    $region11: #{nonlinear_encoder_forward.1} parent=1 // pred_check_branch
      %30 = sbr.rel (0) target = $region13
    $region12: #{nonlinear_encoder_forward.1} parent=1 // pred_region
      _
    $region13: #{nonlinear_encoder_forward.1} parent=1 // pred_fallthru
      _
    // Predicated region
    $region14: #{nonlinear_encoder_forward.1} parent=1 // pred_check
      _
    $region15: #{nonlinear_encoder_forward.1} parent=1 // pred_check_branch
      %32 = sbr.rel (0) target = $region17
    $region16: #{nonlinear_encoder_forward.1} parent=1 // pred_region
      %s34 = ssub.s32 4096, 4096
      %35 = vsyncadd [#allocation6], %s34
      %s36 = sshll.u32 [#allocation5], 4
      %s37 = int_to_ptr.vmem [resolvable:$true] %s36
      %42 = dma.hbm_to_vmem [thread:$0]  %s3, 4096, %s37, [#allocation6], 128, 128, 8
    $region17: #{nonlinear_encoder_forward.1} parent=1 // pred_fallthru
      _
    // Predicated region
    $region18: #{nonlinear_encoder_forward.1} parent=1 // pred_check
      _
    $region19: #{nonlinear_encoder_forward.1} parent=1 // pred_check_branch
      %44 = sbr.rel (0) target = $region21
    $region20: #{nonlinear_encoder_forward.1} parent=1 // pred_region
      _
    $region21: #{nonlinear_encoder_forward.1} parent=1 // pred_fallthru
      _
    // Predicated region
    $region22: #{nonlinear_encoder_forward.1} parent=1 // pred_check
      _
    $region23: #{nonlinear_encoder_forward.1} parent=1 // pred_check_branch
      %46 = sbr.rel (0) target = $region25
    $region24: #{nonlinear_encoder_forward.1} parent=1 // pred_region
      _
    $region25: #{nonlinear_encoder_forward.1} parent=1 // pred_fallthru
      _
    // Predicated region
    $region26: #{nonlinear_encoder_forward.1} parent=1 // pred_check
      _
    $region27: #{nonlinear_encoder_forward.1} parent=1 // pred_check_branch
      %48 = sbr.rel (0) target = $region29
    $region28: #{nonlinear_encoder_forward.1} parent=1 // pred_region
      _
    $region29: #{nonlinear_encoder_forward.1} parent=1 // pred_fallthru
      _
    // Predicated region
    $region30: #{nonlinear_encoder_forward.1} parent=1 // pred_check
      _
    $region31: #{nonlinear_encoder_forward.1} parent=1 // pred_check_branch
      %50 = sbr.rel (0) target = $region33
    $region32: #{nonlinear_encoder_forward.1} parent=1 // pred_region
      %51 = dma.done [#allocation3], 4096
    $region33: #{nonlinear_encoder_forward.1} parent=1 // pred_fallthru
      _
    // Predicated region
    $region34: #{nonlinear_encoder_forward.1} parent=1 // pred_check
      _
    $region35: #{nonlinear_encoder_forward.1} parent=1 // pred_check_branch
      %53 = sbr.rel (0) target = $region37
    $region36: #{nonlinear_encoder_forward.1} parent=1 // pred_region
      %54 = dma.done [#allocation6], 4096
    $region37: #{nonlinear_encoder_forward.1} parent=1 // pred_fallthru
      _
    %v56 = vld [vmem:[%s0] sm:$0xff]
    %v57 = vld [vmem:[%s0 + $0x8] sm:$0xff]
    %v58 = vpack.c.bf16 %v56, %v56
    %v59 = vpack.c.bf16 %v57, %v57
    %v60 = vld [vmem:[#allocation2] sm:$0xff]
    %v61 = vld [vmem:[#allocation2 + $0x8] sm:$0xff]
    %v62 = vld [vmem:[#allocation2 + $0x10] sm:$0xff]
    %v63 = vld [vmem:[#allocation2 + $0x18] sm:$0xff]
    %v64 = vld [vmem:[#allocation2 + $0x20] sm:$0xff]
    %v65 = vld [vmem:[#allocation2 + $0x28] sm:$0xff]
    %v66 = vld [vmem:[#allocation2 + $0x30] sm:$0xff]
    %v67 = vld [vmem:[#allocation2 + $0x38] sm:$0xff]
    %v68 = vld [vmem:[#allocation2 + $0x40] sm:$0xff]
    %v69 = vld [vmem:[#allocation2 + $0x48] sm:$0xff]
    %v70 = vld [vmem:[#allocation2 + $0x50] sm:$0xff]
    %v71 = vld [vmem:[#allocation2 + $0x58] sm:$0xff]
    %v72 = vld [vmem:[#allocation2 + $0x60] sm:$0xff]
    %v73 = vld [vmem:[#allocation2 + $0x68] sm:$0xff]
    %v74 = vld [vmem:[#allocation2 + $0x70] sm:$0xff]
    %v75 = vld [vmem:[#allocation2 + $0x78] sm:$0xff]
    %v76 = vld [vmem:[#allocation2 + $0x80] sm:$0xff]
    %v77 = vld [vmem:[#allocation2 + $0x88] sm:$0xff]
    %v78 = vld [vmem:[#allocation2 + $0x90] sm:$0xff]
    %v79 = vld [vmem:[#allocation2 + $0x98] sm:$0xff]
    %v80 = vld [vmem:[#allocation2 + $0xa0] sm:$0xff]
    %v81 = vld [vmem:[#allocation2 + $0xa8] sm:$0xff]
    %v82 = vld [vmem:[#allocation2 + $0xb0] sm:$0xff]
    %v83 = vld [vmem:[#allocation2 + $0xb8] sm:$0xff]
    %v84 = vld [vmem:[#allocation2 + $0xc0] sm:$0xff]
    %v85 = vld [vmem:[#allocation2 + $0xc8] sm:$0xff]
    %v86 = vld [vmem:[#allocation2 + $0xd0] sm:$0xff]
    %v87 = vld [vmem:[#allocation2 + $0xd8] sm:$0xff]
    %v88 = vld [vmem:[#allocation2 + $0xe0] sm:$0xff]
    %v89 = vld [vmem:[#allocation2 + $0xe8] sm:$0xff]
    %v90 = vld [vmem:[#allocation2 + $0xf0] sm:$0xff]
    %v91 = vld [vmem:[#allocation2 + $0xf8] sm:$0xff]
    %v92 = vld [vmem:[%s2] sm:$0x3]
    %v94 = vlaneseq
    %v95 = vshrl.u32 %v94, 7
    %v96 = vsub.s32 0, %v95
    %v97 = vrot.slane %v92, %v96
    %v98 = vlaneseq
    %v99 = vshrl.u32 %v98, 7
    %v100 = vsub.s32 1, %v99
    %v101 = vrot.slane %v92, %v100
    %v136 = vunpack.c.l.b16 %v60
    %v137 = vunpack.c.h.b16 %v60
    %v138 = vunpack.c.l.b16 %v61
    %v139 = vunpack.c.h.b16 %v61
    %v140 = vunpack.c.l.b16 %v62
    %v141 = vunpack.c.h.b16 %v62
    %v142 = vunpack.c.l.b16 %v63
    %v143 = vunpack.c.h.b16 %v63
    %v144 = vunpack.c.l.b16 %v64
    %v145 = vunpack.c.h.b16 %v64
    %v146 = vunpack.c.l.b16 %v65
    %v147 = vunpack.c.h.b16 %v65
    %v148 = vunpack.c.l.b16 %v66
    %v149 = vunpack.c.h.b16 %v66
    %v150 = vunpack.c.l.b16 %v67
    %v151 = vunpack.c.h.b16 %v67
    %v152 = vunpack.c.l.b16 %v68
    %v153 = vunpack.c.h.b16 %v68
    %v154 = vunpack.c.l.b16 %v69
    %v155 = vunpack.c.h.b16 %v69
    %v156 = vunpack.c.l.b16 %v70
    %v157 = vunpack.c.h.b16 %v70
    %v158 = vunpack.c.l.b16 %v71
    %v159 = vunpack.c.h.b16 %v71
    %v160 = vunpack.c.l.b16 %v72
    %v161 = vunpack.c.h.b16 %v72
    %v162 = vunpack.c.l.b16 %v73
    %v163 = vunpack.c.h.b16 %v73
    %v164 = vunpack.c.l.b16 %v74
    %v165 = vunpack.c.h.b16 %v74
    %v166 = vunpack.c.l.b16 %v75
    %v167 = vunpack.c.h.b16 %v75
    %v168 = vunpack.c.l.b16 %v76
    %v169 = vunpack.c.h.b16 %v76
    %v170 = vunpack.c.l.b16 %v77
    %v171 = vunpack.c.h.b16 %v77
    %v172 = vunpack.c.l.b16 %v78
    %v173 = vunpack.c.h.b16 %v78
    %v174 = vunpack.c.l.b16 %v79
    %v175 = vunpack.c.h.b16 %v79
    %v176 = vunpack.c.l.b16 %v80
    %v177 = vunpack.c.h.b16 %v80
    %v178 = vunpack.c.l.b16 %v81
    %v179 = vunpack.c.h.b16 %v81
    %v180 = vunpack.c.l.b16 %v82
    %v181 = vunpack.c.h.b16 %v82
    %v182 = vunpack.c.l.b16 %v83
    %v183 = vunpack.c.h.b16 %v83
    %v184 = vunpack.c.l.b16 %v84
    %v185 = vunpack.c.h.b16 %v84
    %v186 = vunpack.c.l.b16 %v85
    %v187 = vunpack.c.h.b16 %v85
    %v188 = vunpack.c.l.b16 %v86
    %v189 = vunpack.c.h.b16 %v86
    %v190 = vunpack.c.l.b16 %v87
    %v191 = vunpack.c.h.b16 %v87
    %v192 = vunpack.c.l.b16 %v88
    %v193 = vunpack.c.h.b16 %v88
    %v194 = vunpack.c.l.b16 %v89
    %v195 = vunpack.c.h.b16 %v89
    %v196 = vunpack.c.l.b16 %v90
    %v197 = vunpack.c.h.b16 %v90
    %v198 = vunpack.c.l.b16 %v91
    %v199 = vunpack.c.h.b16 %v91
    %v200 = vpack.c.b16 %v138, %v136
    %v201 = vpack.c.b16 %v139, %v137
    %v202 = vpack.c.b16 %v142, %v140
    %v203 = vpack.c.b16 %v143, %v141
    %v204 = vpack.c.b16 %v146, %v144
    %v205 = vpack.c.b16 %v147, %v145
    %v206 = vpack.c.b16 %v150, %v148
    %v207 = vpack.c.b16 %v151, %v149
    %v208 = vpack.c.b16 %v154, %v152
    %v209 = vpack.c.b16 %v155, %v153
    %v210 = vpack.c.b16 %v158, %v156
    %v211 = vpack.c.b16 %v159, %v157
    %v212 = vpack.c.b16 %v162, %v160
    %v213 = vpack.c.b16 %v163, %v161
    %v214 = vpack.c.b16 %v166, %v164
    %v215 = vpack.c.b16 %v167, %v165
    %v216 = vpack.c.b16 %v170, %v168
    %v217 = vpack.c.b16 %v171, %v169
    %v218 = vpack.c.b16 %v174, %v172
    %v219 = vpack.c.b16 %v175, %v173
    %v220 = vpack.c.b16 %v178, %v176
    %v221 = vpack.c.b16 %v179, %v177
    %v222 = vpack.c.b16 %v182, %v180
    %v223 = vpack.c.b16 %v183, %v181
    %v224 = vpack.c.b16 %v186, %v184
    %v225 = vpack.c.b16 %v187, %v185
    %v226 = vpack.c.b16 %v190, %v188
    %v227 = vpack.c.b16 %v191, %v189
    %v228 = vpack.c.b16 %v194, %v192
    %v229 = vpack.c.b16 %v195, %v193
    %v230 = vpack.c.b16 %v198, %v196
    %v231 = vpack.c.b16 %v199, %v197
    %264 = vmatprep.subr.bf16.mxu0 %v201
    %265 = vmatpush1.bf16.msra.mxu0 %v200
    %266 = vmatprep.subr.bf16.mxu0 %v203
    %267 = vmatpush1.bf16.msra.mxu0 %v202
    %268 = vmatprep.subr.bf16.mxu0 %v205
    %269 = vmatpush1.bf16.msra.mxu0 %v204
    %270 = vmatprep.subr.bf16.mxu0 %v207
    %271 = vmatpush1.bf16.msra.mxu0 %v206
    %272 = vmatprep.subr.bf16.mxu0 %v209
    %273 = vmatpush1.bf16.msra.mxu0 %v208
    %274 = vmatprep.subr.bf16.mxu0 %v211
    %275 = vmatpush1.bf16.msra.mxu0 %v210
    %276 = vmatprep.subr.bf16.mxu0 %v213
    %277 = vmatpush1.bf16.msra.mxu0 %v212
    %278 = vmatprep.subr.bf16.mxu0 %v215
    %279 = vmatpush1.bf16.msra.mxu0 %v214
    %280 = vmatprep.subr.bf16.mxu0 %v217
    %281 = vmatpush1.bf16.msra.mxu0 %v216
    %282 = vmatprep.subr.bf16.mxu0 %v219
    %283 = vmatpush1.bf16.msra.mxu0 %v218
    %284 = vmatprep.subr.bf16.mxu0 %v221
    %285 = vmatpush1.bf16.msra.mxu0 %v220
    %286 = vmatprep.subr.bf16.mxu0 %v223
    %287 = vmatpush1.bf16.msra.mxu0 %v222
    %288 = vmatprep.subr.bf16.mxu0 %v225
    %289 = vmatpush1.bf16.msra.mxu0 %v224
    %290 = vmatprep.subr.bf16.mxu0 %v227
    %291 = vmatpush1.bf16.msra.mxu0 %v226
    %292 = vmatprep.subr.bf16.mxu0 %v229
    %293 = vmatpush1.bf16.msra.mxu0 %v228
    %294 = vmatprep.subr.bf16.mxu0 %v231
    %295 = vmatpush1.bf16.msra.mxu0 %v230
    %296 = vmatprep.mubr.bf16.mxu0 %v59
    %297 = vmatmul.mubr.bf16.gmra.mrb[0].mxu0 %v58
    %v298 = vpop.f32.mrb[0].mxu0
    %v299 = vadd.f32 %v97, %v298
    %v300 = vpop.f32.mrb[0].mxu0
    %v301 = vadd.f32 %v101, %v300
    %v302 = vpop.f32.mrb[0].mxu0
    %v303 = vpop.f32.mrb[0].mxu0
    %304 = vdwg.mxu0
    %v305 = vmul.f32 %v299, 0.01
    %v306 = vmul.f32 %v301, 0.01
    %v307 = vmax.f32 %v299, %v305
    %v308 = vmax.f32 %v301, %v306
    %v309 = vpack.c.bf16 %v307, %v307
    %v310 = vpack.c.bf16 %v308, %v308
    %v311 = vld [vmem:[#allocation5] sm:$0xff]
    %v312 = vld [vmem:[#allocation5 + $0x8] sm:$0xff]
    %v313 = vld [vmem:[#allocation5 + $0x10] sm:$0xff]
    %v314 = vld [vmem:[#allocation5 + $0x18] sm:$0xff]
    %v315 = vld [vmem:[#allocation5 + $0x20] sm:$0xff]
    %v316 = vld [vmem:[#allocation5 + $0x28] sm:$0xff]
    %v317 = vld [vmem:[#allocation5 + $0x30] sm:$0xff]
    %v318 = vld [vmem:[#allocation5 + $0x38] sm:$0xff]
    %v319 = vld [vmem:[#allocation5 + $0x40] sm:$0xff]
    %v320 = vld [vmem:[#allocation5 + $0x48] sm:$0xff]
    %v321 = vld [vmem:[#allocation5 + $0x50] sm:$0xff]
    %v322 = vld [vmem:[#allocation5 + $0x58] sm:$0xff]
    %v323 = vld [vmem:[#allocation5 + $0x60] sm:$0xff]
    %v324 = vld [vmem:[#allocation5 + $0x68] sm:$0xff]
    %v325 = vld [vmem:[#allocation5 + $0x70] sm:$0xff]
    %v326 = vld [vmem:[#allocation5 + $0x78] sm:$0xff]
    %v327 = vld [vmem:[#allocation5 + $0x80] sm:$0xff]
    %v328 = vld [vmem:[#allocation5 + $0x88] sm:$0xff]
    %v329 = vld [vmem:[#allocation5 + $0x90] sm:$0xff]
    %v330 = vld [vmem:[#allocation5 + $0x98] sm:$0xff]
    %v331 = vld [vmem:[#allocation5 + $0xa0] sm:$0xff]
    %v332 = vld [vmem:[#allocation5 + $0xa8] sm:$0xff]
    %v333 = vld [vmem:[#allocation5 + $0xb0] sm:$0xff]
    %v334 = vld [vmem:[#allocation5 + $0xb8] sm:$0xff]
    %v335 = vld [vmem:[#allocation5 + $0xc0] sm:$0xff]
    %v336 = vld [vmem:[#allocation5 + $0xc8] sm:$0xff]
    %v337 = vld [vmem:[#allocation5 + $0xd0] sm:$0xff]
    %v338 = vld [vmem:[#allocation5 + $0xd8] sm:$0xff]
    %v339 = vld [vmem:[#allocation5 + $0xe0] sm:$0xff]
    %v340 = vld [vmem:[#allocation5 + $0xe8] sm:$0xff]
    %v341 = vld [vmem:[#allocation5 + $0xf0] sm:$0xff]
    %v342 = vld [vmem:[#allocation5 + $0xf8] sm:$0xff]
    %v343 = vld [vmem:[%s4] sm:$0x3]
    %v345 = vlaneseq
    %v346 = vshrl.u32 %v345, 7
    %v347 = vsub.s32 0, %v346
    %v348 = vrot.slane %v343, %v347
    %v349 = vlaneseq
    %v350 = vshrl.u32 %v349, 7
    %v351 = vsub.s32 1, %v350
    %v352 = vrot.slane %v343, %v351
    %v387 = vunpack.c.l.b16 %v311
    %v388 = vunpack.c.h.b16 %v311
    %v389 = vunpack.c.l.b16 %v312
    %v390 = vunpack.c.h.b16 %v312
    %v391 = vunpack.c.l.b16 %v313
    %v392 = vunpack.c.h.b16 %v313
    %v393 = vunpack.c.l.b16 %v314
    %v394 = vunpack.c.h.b16 %v314
    %v395 = vunpack.c.l.b16 %v315
    %v396 = vunpack.c.h.b16 %v315
    %v397 = vunpack.c.l.b16 %v316
    %v398 = vunpack.c.h.b16 %v316
    %v399 = vunpack.c.l.b16 %v317
    %v400 = vunpack.c.h.b16 %v317
    %v401 = vunpack.c.l.b16 %v318
    %v402 = vunpack.c.h.b16 %v318
    %v403 = vunpack.c.l.b16 %v319
    %v404 = vunpack.c.h.b16 %v319
    %v405 = vunpack.c.l.b16 %v320
    %v406 = vunpack.c.h.b16 %v320
    %v407 = vunpack.c.l.b16 %v321
    %v408 = vunpack.c.h.b16 %v321
    %v409 = vunpack.c.l.b16 %v322
    %v410 = vunpack.c.h.b16 %v322
    %v411 = vunpack.c.l.b16 %v323
    %v412 = vunpack.c.h.b16 %v323
    %v413 = vunpack.c.l.b16 %v324
    %v414 = vunpack.c.h.b16 %v324
    %v415 = vunpack.c.l.b16 %v325
    %v416 = vunpack.c.h.b16 %v325
    %v417 = vunpack.c.l.b16 %v326
    %v418 = vunpack.c.h.b16 %v326
    %v419 = vunpack.c.l.b16 %v327
    %v420 = vunpack.c.h.b16 %v327
    %v421 = vunpack.c.l.b16 %v328
    %v422 = vunpack.c.h.b16 %v328
    %v423 = vunpack.c.l.b16 %v329
    %v424 = vunpack.c.h.b16 %v329
    %v425 = vunpack.c.l.b16 %v330
    %v426 = vunpack.c.h.b16 %v330
    %v427 = vunpack.c.l.b16 %v331
    %v428 = vunpack.c.h.b16 %v331
    %v429 = vunpack.c.l.b16 %v332
    %v430 = vunpack.c.h.b16 %v332
    %v431 = vunpack.c.l.b16 %v333
    %v432 = vunpack.c.h.b16 %v333
    %v433 = vunpack.c.l.b16 %v334
    %v434 = vunpack.c.h.b16 %v334
    %v435 = vunpack.c.l.b16 %v335
    %v436 = vunpack.c.h.b16 %v335
    %v437 = vunpack.c.l.b16 %v336
    %v438 = vunpack.c.h.b16 %v336
    %v439 = vunpack.c.l.b16 %v337
    %v440 = vunpack.c.h.b16 %v337
    %v441 = vunpack.c.l.b16 %v338
    %v442 = vunpack.c.h.b16 %v338
    %v443 = vunpack.c.l.b16 %v339
    %v444 = vunpack.c.h.b16 %v339
    %v445 = vunpack.c.l.b16 %v340
    %v446 = vunpack.c.h.b16 %v340
    %v447 = vunpack.c.l.b16 %v341
    %v448 = vunpack.c.h.b16 %v341
    %v449 = vunpack.c.l.b16 %v342
    %v450 = vunpack.c.h.b16 %v342
    %v451 = vpack.c.b16 %v389, %v387
    %v452 = vpack.c.b16 %v390, %v388
    %v453 = vpack.c.b16 %v393, %v391
    %v454 = vpack.c.b16 %v394, %v392
    %v455 = vpack.c.b16 %v397, %v395
    %v456 = vpack.c.b16 %v398, %v396
    %v457 = vpack.c.b16 %v401, %v399
    %v458 = vpack.c.b16 %v402, %v400
    %v459 = vpack.c.b16 %v405, %v403
    %v460 = vpack.c.b16 %v406, %v404
    %v461 = vpack.c.b16 %v409, %v407
    %v462 = vpack.c.b16 %v410, %v408
    %v463 = vpack.c.b16 %v413, %v411
    %v464 = vpack.c.b16 %v414, %v412
    %v465 = vpack.c.b16 %v417, %v415
    %v466 = vpack.c.b16 %v418, %v416
    %v467 = vpack.c.b16 %v421, %v419
    %v468 = vpack.c.b16 %v422, %v420
    %v469 = vpack.c.b16 %v425, %v423
    %v470 = vpack.c.b16 %v426, %v424
    %v471 = vpack.c.b16 %v429, %v427
    %v472 = vpack.c.b16 %v430, %v428
    %v473 = vpack.c.b16 %v433, %v431
    %v474 = vpack.c.b16 %v434, %v432
    %v475 = vpack.c.b16 %v437, %v435
    %v476 = vpack.c.b16 %v438, %v436
    %v477 = vpack.c.b16 %v441, %v439
    %v478 = vpack.c.b16 %v442, %v440
    %v479 = vpack.c.b16 %v445, %v443
    %v480 = vpack.c.b16 %v446, %v444
    %v481 = vpack.c.b16 %v449, %v447
    %v482 = vpack.c.b16 %v450, %v448
    %515 = vmatprep.subr.bf16.mxu0 %v452
    %516 = vmatpush1.bf16.msra.mxu0 %v451
    %517 = vmatprep.subr.bf16.mxu0 %v454
    %518 = vmatpush1.bf16.msra.mxu0 %v453
    %519 = vmatprep.subr.bf16.mxu0 %v456
    %520 = vmatpush1.bf16.msra.mxu0 %v455
    %521 = vmatprep.subr.bf16.mxu0 %v458
    %522 = vmatpush1.bf16.msra.mxu0 %v457
    %523 = vmatprep.subr.bf16.mxu0 %v460
    %524 = vmatpush1.bf16.msra.mxu0 %v459
    %525 = vmatprep.subr.bf16.mxu0 %v462
    %526 = vmatpush1.bf16.msra.mxu0 %v461
    %527 = vmatprep.subr.bf16.mxu0 %v464
    %528 = vmatpush1.bf16.msra.mxu0 %v463
    %529 = vmatprep.subr.bf16.mxu0 %v466
    %530 = vmatpush1.bf16.msra.mxu0 %v465
    %531 = vmatprep.subr.bf16.mxu0 %v468
    %532 = vmatpush1.bf16.msra.mxu0 %v467
    %533 = vmatprep.subr.bf16.mxu0 %v470
    %534 = vmatpush1.bf16.msra.mxu0 %v469
    %535 = vmatprep.subr.bf16.mxu0 %v472
    %536 = vmatpush1.bf16.msra.mxu0 %v471
    %537 = vmatprep.subr.bf16.mxu0 %v474
    %538 = vmatpush1.bf16.msra.mxu0 %v473
    %539 = vmatprep.subr.bf16.mxu0 %v476
    %540 = vmatpush1.bf16.msra.mxu0 %v475
    %541 = vmatprep.subr.bf16.mxu0 %v478
    %542 = vmatpush1.bf16.msra.mxu0 %v477
    %543 = vmatprep.subr.bf16.mxu0 %v480
    %544 = vmatpush1.bf16.msra.mxu0 %v479
    %545 = vmatprep.subr.bf16.mxu0 %v482
    %546 = vmatpush1.bf16.msra.mxu0 %v481
    %547 = vmatprep.mubr.bf16.mxu0 %v310
    %548 = vmatmul.mubr.bf16.gmra.mrb[0].mxu0 %v309
    %v549 = vpop.f32.mrb[0].mxu0
    %v550 = vadd.f32 %v348, %v549
    %v551 = vpop.f32.mrb[0].mxu0
    %v552 = vadd.f32 %v352, %v551
    %v553 = vpop.f32.mrb[0].mxu0
    %v554 = vpop.f32.mrb[0].mxu0
    %555 = vdwg.mxu0
    %v556 = vmul.f32 %v550, 0.01
    %v557 = vmul.f32 %v552, 0.01
    %v558 = vmax.f32 %v550, %v556
    %v559 = vmax.f32 %v552, %v557
    %v560 = vpack.c.bf16 %v558, %v558
    %v561 = vpack.c.bf16 %v559, %v559
    %v562 = vld [vmem:[%s5] sm:$0xf]
    %v563 = vld [vmem:[%s5 + $0x4] sm:$0xf]
    %v564 = vld [vmem:[%s5 + $0x8] sm:$0xf]
    %v565 = vld [vmem:[%s5 + $0xc] sm:$0xf]
    %v566 = vld [vmem:[%s5 + $0x10] sm:$0xf]
    %v567 = vld [vmem:[%s5 + $0x14] sm:$0xf]
    %v568 = vld [vmem:[%s5 + $0x18] sm:$0xf]
    %v569 = vld [vmem:[%s5 + $0x1c] sm:$0xf]
    %v570 = vld [vmem:[%s5 + $0x20] sm:$0xf]
    %v571 = vld [vmem:[%s5 + $0x24] sm:$0xf]
    %v572 = vld [vmem:[%s5 + $0x28] sm:$0xf]
    %v573 = vld [vmem:[%s5 + $0x2c] sm:$0xf]
    %v574 = vld [vmem:[%s5 + $0x30] sm:$0xf]
    %v575 = vld [vmem:[%s5 + $0x34] sm:$0xf]
    %v576 = vld [vmem:[%s5 + $0x38] sm:$0xf]
    %v577 = vld [vmem:[%s5 + $0x3c] sm:$0xf]
    %v578 = vld [vmem:[%s5 + $0x40] sm:$0xf]
    %v579 = vld [vmem:[%s5 + $0x44] sm:$0xf]
    %v580 = vld [vmem:[%s5 + $0x48] sm:$0xf]
    %v581 = vld [vmem:[%s5 + $0x4c] sm:$0xf]
    %v582 = vld [vmem:[%s5 + $0x50] sm:$0xf]
    %v583 = vld [vmem:[%s5 + $0x54] sm:$0xf]
    %v584 = vld [vmem:[%s5 + $0x58] sm:$0xf]
    %v585 = vld [vmem:[%s5 + $0x5c] sm:$0xf]
    %v586 = vld [vmem:[%s5 + $0x60] sm:$0xf]
    %v587 = vld [vmem:[%s5 + $0x64] sm:$0xf]
    %v588 = vld [vmem:[%s5 + $0x68] sm:$0xf]
    %v589 = vld [vmem:[%s5 + $0x6c] sm:$0xf]
    %v590 = vld [vmem:[%s5 + $0x70] sm:$0xf]
    %v591 = vld [vmem:[%s5 + $0x74] sm:$0xf]
    %v592 = vld [vmem:[%s5 + $0x78] sm:$0xf]
    %v593 = vld [vmem:[%s5 + $0x7c] sm:$0xf]
    %v594 = vld [vmem:[%s6] sm:$0x1]
    %v596 = vlaneseq
    %v597 = vshrl.u32 %v596, 7
    %v598 = vsub.s32 0, %v597
    %v599 = vrot.slane %v594, %v598
    %v633 = vunpack.c.l.b16 %v562
    %v634 = vunpack.c.l.b16 %v563
    %v635 = vunpack.c.l.b16 %v564
    %v636 = vunpack.c.l.b16 %v565
    %v637 = vunpack.c.l.b16 %v566
    %v638 = vunpack.c.l.b16 %v567
    %v639 = vunpack.c.l.b16 %v568
    %v640 = vunpack.c.l.b16 %v569
    %v641 = vunpack.c.l.b16 %v570
    %v642 = vunpack.c.l.b16 %v571
    %v643 = vunpack.c.l.b16 %v572
    %v644 = vunpack.c.l.b16 %v573
    %v645 = vunpack.c.l.b16 %v574
    %v646 = vunpack.c.l.b16 %v575
    %v647 = vunpack.c.l.b16 %v576
    %v648 = vunpack.c.l.b16 %v577
    %v649 = vunpack.c.l.b16 %v578
    %v650 = vunpack.c.l.b16 %v579
    %v651 = vunpack.c.l.b16 %v580
    %v652 = vunpack.c.l.b16 %v581
    %v653 = vunpack.c.l.b16 %v582
    %v654 = vunpack.c.l.b16 %v583
    %v655 = vunpack.c.l.b16 %v584
    %v656 = vunpack.c.l.b16 %v585
    %v657 = vunpack.c.l.b16 %v586
    %v658 = vunpack.c.l.b16 %v587
    %v659 = vunpack.c.l.b16 %v588
    %v660 = vunpack.c.l.b16 %v589
    %v661 = vunpack.c.l.b16 %v590
    %v662 = vunpack.c.l.b16 %v591
    %v663 = vunpack.c.l.b16 %v592
    %v664 = vunpack.c.l.b16 %v593
    %v665 = vpack.c.b16 %v634, %v633
    %v666 = vpack.c.b16 %v636, %v635
    %v667 = vpack.c.b16 %v638, %v637
    %v668 = vpack.c.b16 %v640, %v639
    %v669 = vpack.c.b16 %v642, %v641
    %v670 = vpack.c.b16 %v644, %v643
    %v671 = vpack.c.b16 %v646, %v645
    %v672 = vpack.c.b16 %v648, %v647
    %v673 = vpack.c.b16 %v650, %v649
    %v674 = vpack.c.b16 %v652, %v651
    %v675 = vpack.c.b16 %v654, %v653
    %v676 = vpack.c.b16 %v656, %v655
    %v677 = vpack.c.b16 %v658, %v657
    %v678 = vpack.c.b16 %v660, %v659
    %v679 = vpack.c.b16 %v662, %v661
    %v680 = vpack.c.b16 %v664, %v663
    %697 = vmatprep.subr.bf16.mxu0 0
    %698 = vmatpush1.bf16.msra.mxu0 %v665
    %699 = vmatprep.subr.bf16.mxu0 0
    %700 = vmatpush1.bf16.msra.mxu0 %v666
    %701 = vmatprep.subr.bf16.mxu0 0
    %702 = vmatpush1.bf16.msra.mxu0 %v667
    %703 = vmatprep.subr.bf16.mxu0 0
    %704 = vmatpush1.bf16.msra.mxu0 %v668
    %705 = vmatprep.subr.bf16.mxu0 0
    %706 = vmatpush1.bf16.msra.mxu0 %v669
    %707 = vmatprep.subr.bf16.mxu0 0
    %708 = vmatpush1.bf16.msra.mxu0 %v670
    %709 = vmatprep.subr.bf16.mxu0 0
    %710 = vmatpush1.bf16.msra.mxu0 %v671
    %711 = vmatprep.subr.bf16.mxu0 0
    %712 = vmatpush1.bf16.msra.mxu0 %v672
    %713 = vmatprep.subr.bf16.mxu0 0
    %714 = vmatpush1.bf16.msra.mxu0 %v673
    %715 = vmatprep.subr.bf16.mxu0 0
    %716 = vmatpush1.bf16.msra.mxu0 %v674
    %717 = vmatprep.subr.bf16.mxu0 0
    %718 = vmatpush1.bf16.msra.mxu0 %v675
    %719 = vmatprep.subr.bf16.mxu0 0
    %720 = vmatpush1.bf16.msra.mxu0 %v676
    %721 = vmatprep.subr.bf16.mxu0 0
    %722 = vmatpush1.bf16.msra.mxu0 %v677
    %723 = vmatprep.subr.bf16.mxu0 0
    %724 = vmatpush1.bf16.msra.mxu0 %v678
    %725 = vmatprep.subr.bf16.mxu0 0
    %726 = vmatpush1.bf16.msra.mxu0 %v679
    %727 = vmatprep.subr.bf16.mxu0 0
    %728 = vmatpush1.bf16.msra.mxu0 %v680
    %729 = vmatprep.mubr.bf16.mxu0 %v561
    %730 = vmatmul.mubr.bf16.gmra.mrb[0].mxu0 %v560
    %v731 = vpop.f32.mrb[0].mxu0
    %v732 = vadd.f32 %v599, %v731
    %v733 = vpop.f32.mrb[0].mxu0
    %v734 = vpop.f32.mrb[0].mxu0
    %v735 = vpop.f32.mrb[0].mxu0
    %736 = vdwg.mxu0
    %v737 = vxor.u32 %v732, 2147483648
    %v738 = vmul.f32 %v737, 1.442695
    %v739 = vpow.pop %v738
    %v740 = vadd.f32 %v739, 1.0
    %v741 = vrcp.pop %v740
    %v742 = vmul.f32 1.0, %v741
    %743 = vst [vmem:[#allocation7] sm:$0xff] %v742
    // Predicated region
    $region38: #{nonlinear_encoder_forward.1} parent=1 // pred_check
      _
    $region39: #{nonlinear_encoder_forward.1} parent=1 // pred_check_branch
      %745 = sbr.rel (0) target = $region41
    $region40: #{nonlinear_encoder_forward.1} parent=1 // pred_region
      %s747 = ssub.s32 128, 128
      %748 = vsyncadd [#allocation4], %s747
      %s750 = sshll.u32 [#allocation7], 4
      %s751 = int_to_ptr.vmem [resolvable:$true] %s750
      %753 = dma.vmem_to_hbm [thread:$0]  %s751, 128, %s7, [#allocation4]
    $region41: #{nonlinear_encoder_forward.1} parent=1 // pred_fallthru
      _
    // Predicated region
    $region42: #{nonlinear_encoder_forward.1} parent=1 // pred_check
      _
    $region43: #{nonlinear_encoder_forward.1} parent=1 // pred_check_branch
      %755 = sbr.rel (0) target = $region45
    $region44: #{nonlinear_encoder_forward.1} parent=1 // pred_region
      %756 = dma.done [#allocation4], 128
    $region45: #{nonlinear_encoder_forward.1} parent=1 // pred_fallthru
      _
    %757 = vsyncpa [#allocation3], 1
    %758 = vsyncpa [#allocation6], 1
    %759 = vsyncpa [#allocation4], 1

</llo_original>
